<compile_context>
chip_gen: v7x
topology: tpu7x:2x2x1
jax: 0.10.0
libtpu: 0.0.40
codegen_flags: <defaults>
</compile_context>

<pallas_src>
import jax
import jax.numpy as jnp
from jax.experimental import pallas as pl
from jax.experimental.pallas import tpu as pltpu


def fused_kernel(x_ref, w12_ref, w3_ref, o_ref):
    # x_ref:  (2*Cin+1, TILE_P)   last row is the constant 1.0 "bias" row
    # w12_ref:(C_mid, 2*Cin+1)    last column is b1+b2 (bias folded into matmul)
    # w3_ref: (C_out*4, C_mid)    rows ordered (co, di, dj)
    v = jnp.dot(w12_ref[...], x_ref[...], preferred_element_type=jnp.float32)
    v = jnp.maximum(v, 0.0)
    # stride-2 kernel-2 transposed conv == pointwise matmul into (co, di, dj) rows
    o_ref[...] = jnp.dot(w3_ref[...], v, preferred_element_type=jnp.float32)


def _pick_tile(P):
    """Pick (TILE_P, P_pad).

    Prefer a tile that divides P exactly (no wrapper-side pad copy, no garbage
    tail columns) and gives >=2 grid steps (so dimension_semantics="parallel"
    can shard across TensorCores on v7x).  Tiny problems run as one full-width
    block; large non-divisible P falls back to padded 2048-wide tiles.
    """
    candidates = (4096, 2048, 1024, 512, 256, 128)
    for t in candidates:
        if P % t == 0 and P // t >= 2:
            return t, P
    for t in candidates:
        if P % t == 0:
            return t, P
    if P <= 4096:
        return P, P
    t = 2048
    return t, ((P + t - 1) // t) * t


def model_forward(x1, x2, params):
    w1, b1, w2, b2, w3 = params  # w1,w2: (Cin, 8); b1,b2: (8,); w3: (8, 16, 2, 2)
    N, Cin, H, W = x1.shape
    Hp, Wp = H + 2, W + 2
    C_mid = w1.shape[1]
    C_out = w3.shape[1]

    # Spatially pad the cheap 6-channel inputs once; border pixels then flow
    # through the kernel like interior pixels (zero input -> bias row only).
    x1p = jnp.pad(x1, ((0, 0), (0, 0), (1, 1), (1, 1)))
    x2p = jnp.pad(x2, ((0, 0), (0, 0), (1, 1), (1, 1)))

    # Channels-first (transposed) layout: pixel dim in lanes.
    xcat = jnp.concatenate([x1p, x2p], axis=1)                       # (N, 2Cin, Hp, Wp)
    P = N * Hp * Wp
    xcat = jnp.transpose(xcat, (1, 0, 2, 3)).reshape(2 * Cin, P).astype(jnp.float32)
    ones = jnp.ones((1, P), jnp.float32)                             # bias row
    xcat = jnp.concatenate([xcat, ones], axis=0)                     # (2Cin+1, P)
    Cx = 2 * Cin + 1

    TILE_P, P_pad = _pick_tile(P)
    if P_pad != P:
        # Only 7 rows -> negligible; padded columns are all-zero (incl. bias row)
        # so they compute exact zeros, discarded by the final slice.
        xcat = jnp.pad(xcat, ((0, 0), (0, P_pad - P)))

    w12 = jnp.concatenate([w1, w2], axis=0).T                        # (C_mid, 2Cin)
    w12 = jnp.concatenate([w12, (b1 + b2).reshape(C_mid, 1)], axis=1)  # bias folded
    w3T = w3.reshape(C_mid, C_out * 4).T                             # (C_out*4, C_mid)

    out_flat = pl.pallas_call(
        fused_kernel,
        out_shape=jax.ShapeDtypeStruct((C_out * 4, P_pad), jnp.float32),
        grid_spec=pltpu.PrefetchScalarGridSpec(
            num_scalar_prefetch=0,
            grid=(P_pad // TILE_P,),
            in_specs=[
                pl.BlockSpec((Cx, TILE_P), lambda i: (0, i)),
                pl.BlockSpec((C_mid, Cx), lambda i: (0, 0)),
                pl.BlockSpec((C_out * 4, C_mid), lambda i: (0, 0)),
            ],
            out_specs=pl.BlockSpec((C_out * 4, TILE_P), lambda i: (0, i)),
        ),
        compiler_params=pltpu.CompilerParams(dimension_semantics=("parallel",)),
    )(xcat, w12, w3T)

    # Single post-kernel rearrangement:
    # out[n, co, 2*ip+di, 2*jp+dj] = out_flat[co*4 + di*2 + dj, n*Hp*Wp + ip*Wp + jp]
    out = out_flat[:, :P].reshape(C_out, 2, 2, N, Hp, Wp)
    out = jnp.transpose(out, (3, 0, 4, 1, 5, 2)).reshape(N, C_out, 2 * Hp, 2 * Wp)
    return out


def reference(x1, x2, params):
    """Independent plain-JAX reference of the same forward semantics."""
    w1, b1, w2, b2, w3 = params
    x1p = jnp.pad(x1, ((0, 0), (0, 0), (1, 1), (1, 1)))
    x2p = jnp.pad(x2, ((0, 0), (0, 0), (1, 1), (1, 1)))
    v1 = jnp.einsum('nchw,co->nohw', x1p, w1) + b1[None, :, None, None]
    v2 = jnp.einsum('nchw,co->nohw', x2p, w2) + b2[None, :, None, None]
    v3 = jnp.maximum(v1 + v2, 0.0)
    N, _, Hp, Wp = v3.shape
    C_out = w3.shape[1]
    out = jnp.zeros((N, C_out, 2 * Hp, 2 * Wp), jnp.float32)
    for di in range(2):
        for dj in range(2):
            out = out.at[:, :, di::2, dj::2].set(
                jnp.einsum('nchw,co->nohw', v3, w3[:, :, di, dj]))
    return out


if __name__ == "__main__":
    key = jax.random.PRNGKey(0)
    k_x1, k_x2, k_w1, k_b1, k_w2, k_b2, k_w3 = jax.random.split(key, 7)

    # small shapes consistent with the module (N, Cin=3, H, W)
    N, Cin, H, W = 2, 3, 16, 16
    C_mid, C_out = 8, 16

    x1 = jax.random.normal(k_x1, (N, Cin, H, W), jnp.float32)
    x2 = jax.random.normal(k_x2, (N, Cin, H, W), jnp.float32)

    # deterministic parameter init (conv1/conv2 weights stored as (Cin, Cout) for 1x1 conv)
    w1 = 0.1 * jax.random.normal(k_w1, (Cin, C_mid), jnp.float32)
    b1 = 0.1 * jax.random.normal(k_b1, (C_mid,), jnp.float32)
    w2 = 0.1 * jax.random.normal(k_w2, (Cin, C_mid), jnp.float32)
    b2 = 0.1 * jax.random.normal(k_b2, (C_mid,), jnp.float32)
    # ConvTranspose2d weight layout (in_channels, out_channels, kH, kW)
    w3 = 0.1 * jax.random.normal(k_w3, (C_mid, C_out, 2, 2), jnp.float32)
    params = (w1, b1, w2, b2, w3)

    out = jax.block_until_ready(model_forward(x1, x2, params))
    ref = jax.block_until_ready(reference(x1, x2, params))

    assert out.shape == (N, C_out, 2 * (H + 2), 2 * (W + 2)), out.shape
    assert jnp.allclose(out, ref, atol=1e-4, rtol=1e-4), float(jnp.max(jnp.abs(out - ref)))
    print("KERNEL_OK")
</pallas_src>

<mosaic_0001>
module attributes {stable_mosaic.version = 11 : i64} {
  func.func @fused_kernel(%arg0: i32, %arg1: memref<7x648xf32, #tpu.memory_space<vmem>>, %arg2: memref<8x7xf32, #tpu.memory_space<vmem>>, %arg3: memref<64x8xf32, #tpu.memory_space<vmem>>, %arg4: memref<64x648xf32, #tpu.memory_space<vmem>>) attributes {dimension_semantics = [#tpu.dimension_semantics<parallel>], iteration_bounds = array<i64: 1>, scalar_prefetch = 0 : i64, scratch_operands = 0 : i64, tpu.core_type = #tpu.core_type<tc>, window_params = [{transform_indices = @transform_0, window_bounds = array<i64: 7, 648>}, {pipeline_mode = #tpu.pipeline_mode<synchronous>, transform_indices = @transform_1, window_bounds = array<i64: 8, 7>}, {pipeline_mode = #tpu.pipeline_mode<synchronous>, transform_indices = @transform_2, window_bounds = array<i64: 64, 8>}, {transform_indices = @transform_3, window_bounds = array<i64: 64, 648>}]} {
    %c0 = arith.constant 0 : index
    %c0_0 = arith.constant 0 : index
    %0 = vector.load %arg2[%c0, %c0_0] : memref<8x7xf32, #tpu.memory_space<vmem>>, vector<8x7xf32>
    %c0_1 = arith.constant 0 : index
    %c0_2 = arith.constant 0 : index
    %1 = vector.load %arg1[%c0_1, %c0_2] : memref<7x648xf32, #tpu.memory_space<vmem>>, vector<7x648xf32>
    %cst = arith.constant dense<0.000000e+00> : vector<8x648xf32>
    %2 = tpu.matmul %0, %1, %cst {dimension_numbers = #tpu.dot_dimension_numbers<[1], [0], [0], [1], [0, 0, 1, 1], [], []>} : vector<8x7xf32>, vector<7x648xf32>, vector<8x648xf32> -> vector<8x648xf32>
    %cst_3 = arith.constant 0.000000e+00 : f32
    %3 = vector.broadcast %cst_3 : f32 to vector<8x648xf32>
    %4 = arith.maximumf %2, %3 : vector<8x648xf32>
    %c0_4 = arith.constant 0 : index
    %c0_5 = arith.constant 0 : index
    %5 = vector.load %arg3[%c0_4, %c0_5] : memref<64x8xf32, #tpu.memory_space<vmem>>, vector<64x8xf32>
    %cst_6 = arith.constant dense<0.000000e+00> : vector<64x648xf32>
    %6 = tpu.matmul %5, %4, %cst_6 {dimension_numbers = #tpu.dot_dimension_numbers<[1], [0], [0], [1], [0, 0, 1, 1], [], []>} : vector<64x8xf32>, vector<8x648xf32>, vector<64x648xf32> -> vector<64x648xf32>
    %c0_7 = arith.constant 0 : index
    %c0_8 = arith.constant 0 : index
    %7 = vector.load %arg4[%c0_7, %c0_8] : memref<64x648xf32, #tpu.memory_space<vmem>>, vector<64x648xf32>
    tpu.vector_store %arg4[%c0_7, %c0_8], %6 {strides = array<i32>} : memref<64x648xf32, #tpu.memory_space<vmem>>, vector<64x648xf32>,
    return
  }
  func.func @transform_0(%arg0: i32) -> (i32, i32) {
    %c0_i32 = arith.constant 0 : i32
    %c0_i32_0 = arith.constant 0 : i32
    return %c0_i32, %arg0 : i32, i32
  }
  func.func @transform_1(%arg0: i32) -> (i32, i32) {
    %c0_i32 = arith.constant 0 : i32
    %c0_i32_0 = arith.constant 0 : i32
    %c0_i32_1 = arith.constant 0 : i32
    return %c0_i32, %c0_i32_0 : i32, i32
  }
  func.func @transform_2(%arg0: i32) -> (i32, i32) {
    %c0_i32 = arith.constant 0 : i32
    %c0_i32_0 = arith.constant 0 : i32
    %c0_i32_1 = arith.constant 0 : i32
    return %c0_i32, %c0_i32_0 : i32, i32
  }
  func.func @transform_3(%arg0: i32) -> (i32, i32) {
    %c0_i32 = arith.constant 0 : i32
    %c0_i32_0 = arith.constant 0 : i32
    return %c0_i32, %arg0 : i32, i32
  }
}

</mosaic_0001>

<llo_original>
// kernel: tpu_custom_call.1
$region0: #{tpu_custom_call.1}
  #allocation0 [shape = 'u32[]', space=smem, size = 0x4, offset = 0x4, fixed_abs, tag = 'smem constant byte address 0x4 - core index']
  #allocation1 [shape = 'u32[144,128]{1,0:T(1,128)}', space=vmem, size = 0x12000, scoped, tag = 'internal scratch']
  %s0 = inlined_call_operand.vmem [shape: f32[7,648], index: 0, kind: input, shape index: {}]
  %s1 = inlined_call_operand.vmem [shape: f32[8,7], index: 1, kind: input, shape index: {}]
  %s2 = inlined_call_operand.vmem [shape: f32[64,8], index: 2, kind: input, shape index: {}]
  %s3 = inlined_call_operand.hbm [shape: f32[64,648], index: 3, kind: output, shape index: {}]
  %s4 = sld [smem:[#allocation0]]
  $region22: #{tpu_custom_call.1} parent=0
    _
  %s6 = ssub.s32 1, %s4
  %s7 = scalar_select 0, %s6, %s4
  $region1: #{tpu_custom_call.1} parent=0
    #allocation2 [shape = 'u8[196608]{0}', space=vmem, size = 0x30000, scoped, tag = 'output window, operand 0, single buffered']
    #allocation3 [shape = 's32[1]{0}', space=sflag, size = 0x4, scoped, tag = 'scoped memory for tpu_custom_call.1']
    %8 = vsyncpa [#allocation3], 0
    // Predicated region
    $region2: #{tpu_custom_call.1} parent=1 // pred_check
      _
    $region3: #{tpu_custom_call.1} parent=1 // pred_check_branch
      %10 = sbr.rel (0) target = $region5
    $region4: #{tpu_custom_call.1} parent=1 // pred_region
      _
    $region5: #{tpu_custom_call.1} parent=1 // pred_fallthru
      _
    // Predicated region
    $region6: #{tpu_custom_call.1} parent=1 // pred_check
      _
    $region7: #{tpu_custom_call.1} parent=1 // pred_check_branch
      %12 = sbr.rel (0) target = $region9
    $region8: #{tpu_custom_call.1} parent=1 // pred_region
      _
    $region9: #{tpu_custom_call.1} parent=1 // pred_fallthru
      _
    // Predicated region
    $region10: #{tpu_custom_call.1} parent=1 // pred_check
      _
    $region11: #{tpu_custom_call.1} parent=1 // pred_check_branch
      %14 = sbr.rel (0) target = $region13
    $region12: #{tpu_custom_call.1} parent=1 // pred_region
      _
    $region13: #{tpu_custom_call.1} parent=1 // pred_fallthru
      _
    %v15 = vld [vmem:[%s1] sm:$0xff]
    %v16 = vld [vmem:[%s0] sm:$0x7f]
    %v17 = vld [vmem:[%s0 + $0x8] sm:$0x7f]
    %v18 = vld [vmem:[%s0 + $0x10] sm:$0x7f]
    %v19 = vld [vmem:[%s0 + $0x18] sm:$0x7f]
    %v20 = vld [vmem:[%s0 + $0x20] sm:$0x7f]
    %v21 = vld [vmem:[%s0 + $0x28] sm:$0x7f]
    %vm22 = vcmask 56320
    %v24 = vsel %vm22, %v15, 0
    %vm26 = vcmask 1046528
    %v28 = vsel %vm26, %v16, 0
    %v31 = vsel %vm26, %v17, 0
    %v34 = vsel %vm26, %v18, 0
    %v37 = vsel %vm26, %v19, 0
    %v40 = vsel %vm26, %v20, 0
    %v43 = vsel %vm26, %v21, 0
    %45 = vmatprep.subr.mxu0 %v31
    %46 = vmatpush1.msra.mxu0 %v28
    %47 = vmatprep.subr.mxu0 0.0
    %48 = vmatpush1.msra.mxu0 0.0
    %49 = vmatprep.subr.mxu0 0.0
    %50 = vmatpush1.msra.mxu0 0.0
    %51 = vmatprep.subr.mxu0 0.0
    %52 = vmatpush1.msra.mxu0 0.0
    %53 = vmatprep.subr.mxu0 0.0
    %54 = vmatpush1.msra.mxu0 0.0
    %55 = vmatprep.subr.mxu0 0.0
    %56 = vmatpush1.msra.mxu0 0.0
    %57 = vmatprep.subr.mxu0 0.0
    %58 = vmatpush1.msra.mxu0 0.0
    %59 = vmatprep.subr.mxu0 0.0
    %60 = vmatpush1.msra.mxu0 0.0
    %61 = vmatprep.subr.mxu0 0.0
    %62 = vmatpush1.msra.mxu0 0.0
    %63 = vmatprep.subr.mxu0 0.0
    %64 = vmatpush1.msra.mxu0 0.0
    %65 = vmatprep.subr.mxu0 0.0
    %66 = vmatpush1.msra.mxu0 0.0
    %67 = vmatprep.subr.mxu0 0.0
    %68 = vmatpush1.msra.mxu0 0.0
    %69 = vmatprep.subr.mxu0 0.0
    %70 = vmatpush1.msra.mxu0 0.0
    %71 = vmatprep.subr.mxu0 0.0
    %72 = vmatpush1.msra.mxu0 0.0
    %73 = vmatprep.subr.mxu0 0.0
    %74 = vmatpush1.msra.mxu0 0.0
    %75 = vmatprep.subr.mxu0 0.0
    %76 = vmatpush1.msra.mxu0 0.0
    %77 = vmatprep.subr.mxu0 0.0
    %78 = vmatpush1.msra.mxu0 0.0
    %79 = vmatprep.subr.mxu0 0.0
    %80 = vmatpush1.msra.mxu0 0.0
    %81 = vmatprep.subr.mxu0 0.0
    %82 = vmatpush1.msra.mxu0 0.0
    %83 = vmatprep.subr.mxu0 0.0
    %84 = vmatpush1.msra.mxu0 0.0
    %85 = vmatprep.subr.mxu0 0.0
    %86 = vmatpush1.msra.mxu0 0.0
    %87 = vmatprep.subr.mxu0 0.0
    %88 = vmatpush1.msra.mxu0 0.0
    %89 = vmatprep.subr.mxu0 0.0
    %90 = vmatpush1.msra.mxu0 0.0
    %91 = vmatprep.subr.mxu0 0.0
    %92 = vmatpush1.msra.mxu0 0.0
    %93 = vmatprep.subr.mxu0 0.0
    %94 = vmatpush1.msra.mxu0 0.0
    %95 = vmatprep.subr.mxu0 0.0
    %96 = vmatpush1.msra.mxu0 0.0
    %97 = vmatprep.subr.mxu0 0.0
    %98 = vmatpush1.msra.mxu0 0.0
    %99 = vmatprep.subr.mxu0 0.0
    %100 = vmatpush1.msra.mxu0 0.0
    %101 = vmatprep.subr.mxu0 0.0
    %102 = vmatpush1.msra.mxu0 0.0
    %103 = vmatprep.subr.mxu0 0.0
    %104 = vmatpush1.msra.mxu0 0.0
    %105 = vmatprep.subr.mxu0 0.0
    %106 = vmatpush1.msra.mxu0 0.0
    %107 = vmatprep.subr.mxu0 0.0
    %108 = vmatpush1.msra.mxu0 0.0
    %109 = vmatprep.mubr.f32.mxu0 0.0
    %110 = vmatmul.mubr.f32.gmra.mrb[0].mxu0 %v24
    %v111 = vpop.f32.mrb[0].mxu0
    %v112 = vadd.f32 0.0, %v111
    %v113 = vpop.f32.mrb[0].mxu0
    %v114 = vadd.f32 0.0, %v113
    %115 = vdwg.mxu0
    %116 = vmatprep.subr.mxu0 %v37
    %117 = vmatpush1.msra.mxu0 %v34
    %118 = vmatprep.subr.mxu0 0.0
    %119 = vmatpush1.msra.mxu0 0.0
    %120 = vmatprep.subr.mxu0 0.0
    %121 = vmatpush1.msra.mxu0 0.0
    %122 = vmatprep.subr.mxu0 0.0
    %123 = vmatpush1.msra.mxu0 0.0
    %124 = vmatprep.subr.mxu0 0.0
    %125 = vmatpush1.msra.mxu0 0.0
    %126 = vmatprep.subr.mxu0 0.0
    %127 = vmatpush1.msra.mxu0 0.0
    %128 = vmatprep.subr.mxu0 0.0
    %129 = vmatpush1.msra.mxu0 0.0
    %130 = vmatprep.subr.mxu0 0.0
    %131 = vmatpush1.msra.mxu0 0.0
    %132 = vmatprep.subr.mxu0 0.0
    %133 = vmatpush1.msra.mxu0 0.0
    %134 = vmatprep.subr.mxu0 0.0
    %135 = vmatpush1.msra.mxu0 0.0
    %136 = vmatprep.subr.mxu0 0.0
    %137 = vmatpush1.msra.mxu0 0.0
    %138 = vmatprep.subr.mxu0 0.0
    %139 = vmatpush1.msra.mxu0 0.0
    %140 = vmatprep.subr.mxu0 0.0
    %141 = vmatpush1.msra.mxu0 0.0
    %142 = vmatprep.subr.mxu0 0.0
    %143 = vmatpush1.msra.mxu0 0.0
    %144 = vmatprep.subr.mxu0 0.0
    %145 = vmatpush1.msra.mxu0 0.0
    %146 = vmatprep.subr.mxu0 0.0
    %147 = vmatpush1.msra.mxu0 0.0
    %148 = vmatprep.subr.mxu0 0.0
    %149 = vmatpush1.msra.mxu0 0.0
    %150 = vmatprep.subr.mxu0 0.0
    %151 = vmatpush1.msra.mxu0 0.0
    %152 = vmatprep.subr.mxu0 0.0
    %153 = vmatpush1.msra.mxu0 0.0
    %154 = vmatprep.subr.mxu0 0.0
    %155 = vmatpush1.msra.mxu0 0.0
    %156 = vmatprep.subr.mxu0 0.0
    %157 = vmatpush1.msra.mxu0 0.0
    %158 = vmatprep.subr.mxu0 0.0
    %159 = vmatpush1.msra.mxu0 0.0
    %160 = vmatprep.subr.mxu0 0.0
    %161 = vmatpush1.msra.mxu0 0.0
    %162 = vmatprep.subr.mxu0 0.0
    %163 = vmatpush1.msra.mxu0 0.0
    %164 = vmatprep.subr.mxu0 0.0
    %165 = vmatpush1.msra.mxu0 0.0
    %166 = vmatprep.subr.mxu0 0.0
    %167 = vmatpush1.msra.mxu0 0.0
    %168 = vmatprep.subr.mxu0 0.0
    %169 = vmatpush1.msra.mxu0 0.0
    %170 = vmatprep.subr.mxu0 0.0
    %171 = vmatpush1.msra.mxu0 0.0
    %172 = vmatprep.subr.mxu0 0.0
    %173 = vmatpush1.msra.mxu0 0.0
    %174 = vmatprep.subr.mxu0 0.0
    %175 = vmatpush1.msra.mxu0 0.0
    %176 = vmatprep.subr.mxu0 0.0
    %177 = vmatpush1.msra.mxu0 0.0
    %178 = vmatprep.subr.mxu0 0.0
    %179 = vmatpush1.msra.mxu0 0.0
    %180 = vmatprep.mubr.f32.mxu0 0.0
    %181 = vmatmul.mubr.f32.gmra.mrb[0].mxu0 %v24
    %v182 = vpop.f32.mrb[0].mxu0
    %v183 = vadd.f32 0.0, %v182
    %v184 = vpop.f32.mrb[0].mxu0
    %v185 = vadd.f32 0.0, %v184
    %186 = vdwg.mxu0
    %187 = vmatprep.subr.mxu0 %v43
    %188 = vmatpush1.msra.mxu0 %v40
    %189 = vmatprep.subr.mxu0 0.0
    %190 = vmatpush1.msra.mxu0 0.0
    %191 = vmatprep.subr.mxu0 0.0
    %192 = vmatpush1.msra.mxu0 0.0
    %193 = vmatprep.subr.mxu0 0.0
    %194 = vmatpush1.msra.mxu0 0.0
    %195 = vmatprep.subr.mxu0 0.0
    %196 = vmatpush1.msra.mxu0 0.0
    %197 = vmatprep.subr.mxu0 0.0
    %198 = vmatpush1.msra.mxu0 0.0
    %199 = vmatprep.subr.mxu0 0.0
    %200 = vmatpush1.msra.mxu0 0.0
    %201 = vmatprep.subr.mxu0 0.0
    %202 = vmatpush1.msra.mxu0 0.0
    %203 = vmatprep.subr.mxu0 0.0
    %204 = vmatpush1.msra.mxu0 0.0
    %205 = vmatprep.subr.mxu0 0.0
    %206 = vmatpush1.msra.mxu0 0.0
    %207 = vmatprep.subr.mxu0 0.0
    %208 = vmatpush1.msra.mxu0 0.0
    %209 = vmatprep.subr.mxu0 0.0
    %210 = vmatpush1.msra.mxu0 0.0
    %211 = vmatprep.subr.mxu0 0.0
    %212 = vmatpush1.msra.mxu0 0.0
    %213 = vmatprep.subr.mxu0 0.0
    %214 = vmatpush1.msra.mxu0 0.0
    %215 = vmatprep.subr.mxu0 0.0
    %216 = vmatpush1.msra.mxu0 0.0
    %217 = vmatprep.subr.mxu0 0.0
    %218 = vmatpush1.msra.mxu0 0.0
    %219 = vmatprep.subr.mxu0 0.0
    %220 = vmatpush1.msra.mxu0 0.0
    %221 = vmatprep.subr.mxu0 0.0
    %222 = vmatpush1.msra.mxu0 0.0
    %223 = vmatprep.subr.mxu0 0.0
    %224 = vmatpush1.msra.mxu0 0.0
    %225 = vmatprep.subr.mxu0 0.0
    %226 = vmatpush1.msra.mxu0 0.0
    %227 = vmatprep.subr.mxu0 0.0
    %228 = vmatpush1.msra.mxu0 0.0
    %229 = vmatprep.subr.mxu0 0.0
    %230 = vmatpush1.msra.mxu0 0.0
    %231 = vmatprep.subr.mxu0 0.0
    %232 = vmatpush1.msra.mxu0 0.0
    %233 = vmatprep.subr.mxu0 0.0
    %234 = vmatpush1.msra.mxu0 0.0
    %235 = vmatprep.subr.mxu0 0.0
    %236 = vmatpush1.msra.mxu0 0.0
    %237 = vmatprep.subr.mxu0 0.0
    %238 = vmatpush1.msra.mxu0 0.0
    %239 = vmatprep.subr.mxu0 0.0
    %240 = vmatpush1.msra.mxu0 0.0
    %241 = vmatprep.subr.mxu0 0.0
    %242 = vmatpush1.msra.mxu0 0.0
    %243 = vmatprep.subr.mxu0 0.0
    %244 = vmatpush1.msra.mxu0 0.0
    %245 = vmatprep.subr.mxu0 0.0
    %246 = vmatpush1.msra.mxu0 0.0
    %247 = vmatprep.subr.mxu0 0.0
    %248 = vmatpush1.msra.mxu0 0.0
    %249 = vmatprep.subr.mxu0 0.0
    %250 = vmatpush1.msra.mxu0 0.0
    %251 = vmatprep.mubr.f32.mxu0 0.0
    %252 = vmatmul.mubr.f32.gmra.mrb[0].mxu0 %v24
    %v253 = vpop.f32.mrb[0].mxu0
    %v254 = vadd.f32 0.0, %v253
    %v255 = vpop.f32.mrb[0].mxu0
    %v256 = vadd.f32 0.0, %v255
    %257 = vdwg.mxu0
    %v258 = vmax.f32 %v112, 0.0
    %v259 = vmax.f32 %v114, 0.0
    %v260 = vmax.f32 %v183, 0.0
    %v261 = vmax.f32 %v185, 0.0
    %v262 = vmax.f32 %v254, 0.0
    %v263 = vmax.f32 %v256, 0.0
    %v264 = vld [vmem:[%s2] sm:$0xff]
    %v265 = vld [vmem:[%s2 + $0x8] sm:$0xff]
    %v266 = vld [vmem:[%s2 + $0x10] sm:$0xff]
    %v267 = vld [vmem:[%s2 + $0x18] sm:$0xff]
    %v268 = vld [vmem:[%s2 + $0x20] sm:$0xff]
    %v269 = vld [vmem:[%s2 + $0x28] sm:$0xff]
    %v270 = vld [vmem:[%s2 + $0x30] sm:$0xff]
    %v271 = vld [vmem:[%s2 + $0x38] sm:$0xff]
    %vm272 = vcmask 64512
    %v274 = vsel %vm272, %v264, 0
    %v277 = vsel %vm272, %v265, 0
    %v280 = vsel %vm272, %v266, 0
    %v283 = vsel %vm272, %v267, 0
    %v286 = vsel %vm272, %v268, 0
    %v289 = vsel %vm272, %v269, 0
    %v292 = vsel %vm272, %v270, 0
    %v295 = vsel %vm272, %v271, 0
    %297 = vmatprep.subr.mxu0 %v259
    %298 = vmatpush1.msra.mxu0 %v258
    %299 = vmatprep.subr.mxu0 0.0
    %300 = vmatpush1.msra.mxu0 0.0
    %301 = vmatprep.subr.mxu0 0.0
    %302 = vmatpush1.msra.mxu0 0.0
    %303 = vmatprep.subr.mxu0 0.0
    %304 = vmatpush1.msra.mxu0 0.0
    %305 = vmatprep.subr.mxu0 0.0
    %306 = vmatpush1.msra.mxu0 0.0
    %307 = vmatprep.subr.mxu0 0.0
    %308 = vmatpush1.msra.mxu0 0.0
    %309 = vmatprep.subr.mxu0 0.0
    %310 = vmatpush1.msra.mxu0 0.0
    %311 = vmatprep.subr.mxu0 0.0
    %312 = vmatpush1.msra.mxu0 0.0
    %313 = vmatprep.subr.mxu0 0.0
    %314 = vmatpush1.msra.mxu0 0.0
    %315 = vmatprep.subr.mxu0 0.0
    %316 = vmatpush1.msra.mxu0 0.0
    %317 = vmatprep.subr.mxu0 0.0
    %318 = vmatpush1.msra.mxu0 0.0
    %319 = vmatprep.subr.mxu0 0.0
    %320 = vmatpush1.msra.mxu0 0.0
    %321 = vmatprep.subr.mxu0 0.0
    %322 = vmatpush1.msra.mxu0 0.0
    %323 = vmatprep.subr.mxu0 0.0
    %324 = vmatpush1.msra.mxu0 0.0
    %325 = vmatprep.subr.mxu0 0.0
    %326 = vmatpush1.msra.mxu0 0.0
    %327 = vmatprep.subr.mxu0 0.0
    %328 = vmatpush1.msra.mxu0 0.0
    %329 = vmatprep.subr.mxu0 0.0
    %330 = vmatpush1.msra.mxu0 0.0
    %331 = vmatprep.subr.mxu0 0.0
    %332 = vmatpush1.msra.mxu0 0.0
    %333 = vmatprep.subr.mxu0 0.0
    %334 = vmatpush1.msra.mxu0 0.0
    %335 = vmatprep.subr.mxu0 0.0
    %336 = vmatpush1.msra.mxu0 0.0
    %337 = vmatprep.subr.mxu0 0.0
    %338 = vmatpush1.msra.mxu0 0.0
    %339 = vmatprep.subr.mxu0 0.0
    %340 = vmatpush1.msra.mxu0 0.0
    %341 = vmatprep.subr.mxu0 0.0
    %342 = vmatpush1.msra.mxu0 0.0
    %343 = vmatprep.subr.mxu0 0.0
    %344 = vmatpush1.msra.mxu0 0.0
    %345 = vmatprep.subr.mxu0 0.0
    %346 = vmatpush1.msra.mxu0 0.0
    %347 = vmatprep.subr.mxu0 0.0
    %348 = vmatpush1.msra.mxu0 0.0
    %349 = vmatprep.subr.mxu0 0.0
    %350 = vmatpush1.msra.mxu0 0.0
    %351 = vmatprep.subr.mxu0 0.0
    %352 = vmatpush1.msra.mxu0 0.0
    %353 = vmatprep.subr.mxu0 0.0
    %354 = vmatpush1.msra.mxu0 0.0
    %355 = vmatprep.subr.mxu0 0.0
    %356 = vmatpush1.msra.mxu0 0.0
    %357 = vmatprep.subr.mxu0 0.0
    %358 = vmatpush1.msra.mxu0 0.0
    %359 = vmatprep.subr.mxu0 0.0
    %360 = vmatpush1.msra.mxu0 0.0
    %361 = vmatprep.mubr.f32.mxu0 0.0
    %362 = vmatmul.mubr.f32.gmra.mrb[0].mxu0 %v274
    %v363 = vpop.f32.mrb[0].mxu0
    %v364 = vadd.f32 0.0, %v363
    %v365 = vpop.f32.mrb[0].mxu0
    %v366 = vadd.f32 0.0, %v365
    %367 = vmatprep.mubr.f32.mxu0 0.0
    %368 = vmatmul.mubr.f32.gmra.mrb[0].mxu0 %v277
    %v369 = vpop.f32.mrb[0].mxu0
    %v370 = vadd.f32 0.0, %v369
    %v371 = vpop.f32.mrb[0].mxu0
    %v372 = vadd.f32 0.0, %v371
    %373 = vmatprep.mubr.f32.mxu0 0.0
    %374 = vmatmul.mubr.f32.gmra.mrb[0].mxu0 %v280
    %v375 = vpop.f32.mrb[0].mxu0
    %v376 = vadd.f32 0.0, %v375
    %v377 = vpop.f32.mrb[0].mxu0
    %v378 = vadd.f32 0.0, %v377
    %379 = vmatprep.mubr.f32.mxu0 0.0
    %380 = vmatmul.mubr.f32.gmra.mrb[0].mxu0 %v283
    %v381 = vpop.f32.mrb[0].mxu0
    %v382 = vadd.f32 0.0, %v381
    %v383 = vpop.f32.mrb[0].mxu0
    %v384 = vadd.f32 0.0, %v383
    %385 = vmatprep.mubr.f32.mxu0 0.0
    %386 = vmatmul.mubr.f32.gmra.mrb[0].mxu0 %v286
    %v387 = vpop.f32.mrb[0].mxu0
    %v388 = vadd.f32 0.0, %v387
    %v389 = vpop.f32.mrb[0].mxu0
    %v390 = vadd.f32 0.0, %v389
    %391 = vmatprep.mubr.f32.mxu0 0.0
    %392 = vmatmul.mubr.f32.gmra.mrb[0].mxu0 %v289
    %v393 = vpop.f32.mrb[0].mxu0
    %v394 = vadd.f32 0.0, %v393
    %v395 = vpop.f32.mrb[0].mxu0
    %v396 = vadd.f32 0.0, %v395
    %397 = vmatprep.mubr.f32.mxu0 0.0
    %398 = vmatmul.mubr.f32.gmra.mrb[0].mxu0 %v292
    %v399 = vpop.f32.mrb[0].mxu0
    %v400 = vadd.f32 0.0, %v399
    %v401 = vpop.f32.mrb[0].mxu0
    %v402 = vadd.f32 0.0, %v401
    %403 = vmatprep.mubr.f32.mxu0 0.0
    %404 = vmatmul.mubr.f32.gmra.mrb[0].mxu0 %v295
    %v405 = vpop.f32.mrb[0].mxu0
    %v406 = vadd.f32 0.0, %v405
    %v407 = vpop.f32.mrb[0].mxu0
    %v408 = vadd.f32 0.0, %v407
    %409 = vdwg.mxu0
    %410 = vmatprep.subr.mxu0 %v261
    %411 = vmatpush1.msra.mxu0 %v260
    %412 = vmatprep.subr.mxu0 0.0
    %413 = vmatpush1.msra.mxu0 0.0
    %414 = vmatprep.subr.mxu0 0.0
    %415 = vmatpush1.msra.mxu0 0.0
    %416 = vmatprep.subr.mxu0 0.0
    %417 = vmatpush1.msra.mxu0 0.0
    %418 = vmatprep.subr.mxu0 0.0
    %419 = vmatpush1.msra.mxu0 0.0
    %420 = vmatprep.subr.mxu0 0.0
    %421 = vmatpush1.msra.mxu0 0.0
    %422 = vmatprep.subr.mxu0 0.0
    %423 = vmatpush1.msra.mxu0 0.0
    %424 = vmatprep.subr.mxu0 0.0
    %425 = vmatpush1.msra.mxu0 0.0
    %426 = vmatprep.subr.mxu0 0.0
    %427 = vmatpush1.msra.mxu0 0.0
    %428 = vmatprep.subr.mxu0 0.0
    %429 = vmatpush1.msra.mxu0 0.0
    %430 = vmatprep.subr.mxu0 0.0
    %431 = vmatpush1.msra.mxu0 0.0
    %432 = vmatprep.subr.mxu0 0.0
    %433 = vmatpush1.msra.mxu0 0.0
    %434 = vmatprep.subr.mxu0 0.0
    %435 = vmatpush1.msra.mxu0 0.0
    %436 = vmatprep.subr.mxu0 0.0
    %437 = vmatpush1.msra.mxu0 0.0
    %438 = vmatprep.subr.mxu0 0.0
    %439 = vmatpush1.msra.mxu0 0.0
    %440 = vmatprep.subr.mxu0 0.0
    %441 = vmatpush1.msra.mxu0 0.0
    %442 = vmatprep.subr.mxu0 0.0
    %443 = vmatpush1.msra.mxu0 0.0
    %444 = vmatprep.subr.mxu0 0.0
    %445 = vmatpush1.msra.mxu0 0.0
    %446 = vmatprep.subr.mxu0 0.0
    %447 = vmatpush1.msra.mxu0 0.0
    %448 = vmatprep.subr.mxu0 0.0
    %449 = vmatpush1.msra.mxu0 0.0
    %450 = vmatprep.subr.mxu0 0.0
    %451 = vmatpush1.msra.mxu0 0.0
    %452 = vmatprep.subr.mxu0 0.0
    %453 = vmatpush1.msra.mxu0 0.0
    %454 = vmatprep.subr.mxu0 0.0
    %455 = vmatpush1.msra.mxu0 0.0
    %456 = vmatprep.subr.mxu0 0.0
    %457 = vmatpush1.msra.mxu0 0.0
    %458 = vmatprep.subr.mxu0 0.0
    %459 = vmatpush1.msra.mxu0 0.0
    %460 = vmatprep.subr.mxu0 0.0
    %461 = vmatpush1.msra.mxu0 0.0
    %462 = vmatprep.subr.mxu0 0.0
    %463 = vmatpush1.msra.mxu0 0.0
    %464 = vmatprep.subr.mxu0 0.0
    %465 = vmatpush1.msra.mxu0 0.0
    %466 = vmatprep.subr.mxu0 0.0
    %467 = vmatpush1.msra.mxu0 0.0
    %468 = vmatprep.subr.mxu0 0.0
    %469 = vmatpush1.msra.mxu0 0.0
    %470 = vmatprep.subr.mxu0 0.0
    %471 = vmatpush1.msra.mxu0 0.0
    %472 = vmatprep.subr.mxu0 0.0
    %473 = vmatpush1.msra.mxu0 0.0
    %474 = vmatprep.mubr.f32.mxu0 0.0
    %475 = vmatmul.mubr.f32.gmra.mrb[0].mxu0 %v274
    %v476 = vpop.f32.mrb[0].mxu0
    %v477 = vadd.f32 0.0, %v476
    %v478 = vpop.f32.mrb[0].mxu0
    %v479 = vadd.f32 0.0, %v478
    %480 = vmatprep.mubr.f32.mxu0 0.0
    %481 = vmatmul.mubr.f32.gmra.mrb[0].mxu0 %v277
    %v482 = vpop.f32.mrb[0].mxu0
    %v483 = vadd.f32 0.0, %v482
    %v484 = vpop.f32.mrb[0].mxu0
    %v485 = vadd.f32 0.0, %v484
    %486 = vmatprep.mubr.f32.mxu0 0.0
    %487 = vmatmul.mubr.f32.gmra.mrb[0].mxu0 %v280
    %v488 = vpop.f32.mrb[0].mxu0
    %v489 = vadd.f32 0.0, %v488
    %v490 = vpop.f32.mrb[0].mxu0
    %v491 = vadd.f32 0.0, %v490
    %492 = vmatprep.mubr.f32.mxu0 0.0
    %493 = vmatmul.mubr.f32.gmra.mrb[0].mxu0 %v283
    %v494 = vpop.f32.mrb[0].mxu0
    %v495 = vadd.f32 0.0, %v494
    %v496 = vpop.f32.mrb[0].mxu0
    %v497 = vadd.f32 0.0, %v496
    %498 = vmatprep.mubr.f32.mxu0 0.0
    %499 = vmatmul.mubr.f32.gmra.mrb[0].mxu0 %v286
    %v500 = vpop.f32.mrb[0].mxu0
    %v501 = vadd.f32 0.0, %v500
    %v502 = vpop.f32.mrb[0].mxu0
    %v503 = vadd.f32 0.0, %v502
    %504 = vmatprep.mubr.f32.mxu0 0.0
    %505 = vmatmul.mubr.f32.gmra.mrb[0].mxu0 %v289
    %v506 = vpop.f32.mrb[0].mxu0
    %v507 = vadd.f32 0.0, %v506
    %v508 = vpop.f32.mrb[0].mxu0
    %v509 = vadd.f32 0.0, %v508
    %510 = vmatprep.mubr.f32.mxu0 0.0
    %511 = vmatmul.mubr.f32.gmra.mrb[0].mxu0 %v292
    %v512 = vpop.f32.mrb[0].mxu0
    %v513 = vadd.f32 0.0, %v512
    %v514 = vpop.f32.mrb[0].mxu0
    %v515 = vadd.f32 0.0, %v514
    %516 = vmatprep.mubr.f32.mxu0 0.0
    %517 = vmatmul.mubr.f32.gmra.mrb[0].mxu0 %v295
    %v518 = vpop.f32.mrb[0].mxu0
    %v519 = vadd.f32 0.0, %v518
    %v520 = vpop.f32.mrb[0].mxu0
    %v521 = vadd.f32 0.0, %v520
    %522 = vdwg.mxu0
    %523 = vmatprep.subr.mxu0 %v263
    %524 = vmatpush1.msra.mxu0 %v262
    %525 = vmatprep.subr.mxu0 0.0
    %526 = vmatpush1.msra.mxu0 0.0
    %527 = vmatprep.subr.mxu0 0.0
    %528 = vmatpush1.msra.mxu0 0.0
    %529 = vmatprep.subr.mxu0 0.0
    %530 = vmatpush1.msra.mxu0 0.0
    %531 = vmatprep.subr.mxu0 0.0
    %532 = vmatpush1.msra.mxu0 0.0
    %533 = vmatprep.subr.mxu0 0.0
    %534 = vmatpush1.msra.mxu0 0.0
    %535 = vmatprep.subr.mxu0 0.0
    %536 = vmatpush1.msra.mxu0 0.0
    %537 = vmatprep.subr.mxu0 0.0
    %538 = vmatpush1.msra.mxu0 0.0
    %539 = vmatprep.subr.mxu0 0.0
    %540 = vmatpush1.msra.mxu0 0.0
    %541 = vmatprep.subr.mxu0 0.0
    %542 = vmatpush1.msra.mxu0 0.0
    %543 = vmatprep.subr.mxu0 0.0
    %544 = vmatpush1.msra.mxu0 0.0
    %545 = vmatprep.subr.mxu0 0.0
    %546 = vmatpush1.msra.mxu0 0.0
    %547 = vmatprep.subr.mxu0 0.0
    %548 = vmatpush1.msra.mxu0 0.0
    %549 = vmatprep.subr.mxu0 0.0
    %550 = vmatpush1.msra.mxu0 0.0
    %551 = vmatprep.subr.mxu0 0.0
    %552 = vmatpush1.msra.mxu0 0.0
    %553 = vmatprep.subr.mxu0 0.0
    %554 = vmatpush1.msra.mxu0 0.0
    %555 = vmatprep.subr.mxu0 0.0
    %556 = vmatpush1.msra.mxu0 0.0
    %557 = vmatprep.subr.mxu0 0.0
    %558 = vmatpush1.msra.mxu0 0.0
    %559 = vmatprep.subr.mxu0 0.0
    %560 = vmatpush1.msra.mxu0 0.0
    %561 = vmatprep.subr.mxu0 0.0
    %562 = vmatpush1.msra.mxu0 0.0
    %563 = vmatprep.subr.mxu0 0.0
    %564 = vmatpush1.msra.mxu0 0.0
    %565 = vmatprep.subr.mxu0 0.0
    %566 = vmatpush1.msra.mxu0 0.0
    %567 = vmatprep.subr.mxu0 0.0
    %568 = vmatpush1.msra.mxu0 0.0
    %569 = vmatprep.subr.mxu0 0.0
    %570 = vmatpush1.msra.mxu0 0.0
    %571 = vmatprep.subr.mxu0 0.0
    %572 = vmatpush1.msra.mxu0 0.0
    %573 = vmatprep.subr.mxu0 0.0
    %574 = vmatpush1.msra.mxu0 0.0
    %575 = vmatprep.subr.mxu0 0.0
    %576 = vmatpush1.msra.mxu0 0.0
    %577 = vmatprep.subr.mxu0 0.0
    %578 = vmatpush1.msra.mxu0 0.0
    %579 = vmatprep.subr.mxu0 0.0
    %580 = vmatpush1.msra.mxu0 0.0
    %581 = vmatprep.subr.mxu0 0.0
    %582 = vmatpush1.msra.mxu0 0.0
    %583 = vmatprep.subr.mxu0 0.0
    %584 = vmatpush1.msra.mxu0 0.0
    %585 = vmatprep.subr.mxu0 0.0
    %586 = vmatpush1.msra.mxu0 0.0
    %587 = vmatprep.mubr.f32.mxu0 0.0
    %588 = vmatmul.mubr.f32.gmra.mrb[0].mxu0 %v274
    %v589 = vpop.f32.mrb[0].mxu0
    %v590 = vadd.f32 0.0, %v589
    %v591 = vpop.f32.mrb[0].mxu0
    %v592 = vadd.f32 0.0, %v591
    %593 = vmatprep.mubr.f32.mxu0 0.0
    %594 = vmatmul.mubr.f32.gmra.mrb[0].mxu0 %v277
    %v595 = vpop.f32.mrb[0].mxu0
    %v596 = vadd.f32 0.0, %v595
    %v597 = vpop.f32.mrb[0].mxu0
    %v598 = vadd.f32 0.0, %v597
    %599 = vmatprep.mubr.f32.mxu0 0.0
    %600 = vmatmul.mubr.f32.gmra.mrb[0].mxu0 %v280
    %v601 = vpop.f32.mrb[0].mxu0
    %v602 = vadd.f32 0.0, %v601
    %v603 = vpop.f32.mrb[0].mxu0
    %v604 = vadd.f32 0.0, %v603
    %605 = vmatprep.mubr.f32.mxu0 0.0
    %606 = vmatmul.mubr.f32.gmra.mrb[0].mxu0 %v283
    %v607 = vpop.f32.mrb[0].mxu0
    %v608 = vadd.f32 0.0, %v607
    %v609 = vpop.f32.mrb[0].mxu0
    %v610 = vadd.f32 0.0, %v609
    %611 = vmatprep.mubr.f32.mxu0 0.0
    %612 = vmatmul.mubr.f32.gmra.mrb[0].mxu0 %v286
    %v613 = vpop.f32.mrb[0].mxu0
    %v614 = vadd.f32 0.0, %v613
    %v615 = vpop.f32.mrb[0].mxu0
    %v616 = vadd.f32 0.0, %v615
    %617 = vmatprep.mubr.f32.mxu0 0.0
    %618 = vmatmul.mubr.f32.gmra.mrb[0].mxu0 %v289
    %v619 = vpop.f32.mrb[0].mxu0
    %v620 = vadd.f32 0.0, %v619
    %v621 = vpop.f32.mrb[0].mxu0
    %v622 = vadd.f32 0.0, %v621
    %623 = vmatprep.mubr.f32.mxu0 0.0
    %624 = vmatmul.mubr.f32.gmra.mrb[0].mxu0 %v292
    %v625 = vpop.f32.mrb[0].mxu0
    %v626 = vadd.f32 0.0, %v625
    %v627 = vpop.f32.mrb[0].mxu0
    %v628 = vadd.f32 0.0, %v627
    %629 = vmatprep.mubr.f32.mxu0 0.0
    %630 = vmatmul.mubr.f32.gmra.mrb[0].mxu0 %v295
    %v631 = vpop.f32.mrb[0].mxu0
    %v632 = vadd.f32 0.0, %v631
    %v633 = vpop.f32.mrb[0].mxu0
    %v634 = vadd.f32 0.0, %v633
    %635 = vdwg.mxu0
    %636 = vst [vmem:[#allocation2] sm:$0xff] %v364
    %637 = vst [vmem:[#allocation2 + $0x8] sm:$0xff] %v366
    %638 = vst [vmem:[#allocation2 + $0x10] sm:$0xff] %v477
    %639 = vst [vmem:[#allocation2 + $0x18] sm:$0xff] %v479
    %640 = vst [vmem:[#allocation2 + $0x20] sm:$0xff] %v590
    %641 = vst.msk [vmem:[#allocation2 + $0x28] sm:$0xff] %vm272, %v592
    %642 = vst [vmem:[#allocation2 + $0x30] sm:$0xff] %v370
    %643 = vst [vmem:[#allocation2 + $0x38] sm:$0xff] %v372
    %644 = vst [vmem:[#allocation2 + $0x40] sm:$0xff] %v483
    %645 = vst [vmem:[#allocation2 + $0x48] sm:$0xff] %v485
    %646 = vst [vmem:[#allocation2 + $0x50] sm:$0xff] %v596
    %647 = vst.msk [vmem:[#allocation2 + $0x58] sm:$0xff] %vm272, %v598
    %648 = vst [vmem:[#allocation2 + $0x60] sm:$0xff] %v376
    %649 = vst [vmem:[#allocation2 + $0x68] sm:$0xff] %v378
    %650 = vst [vmem:[#allocation2 + $0x70] sm:$0xff] %v489
    %651 = vst [vmem:[#allocation2 + $0x78] sm:$0xff] %v491
    %652 = vst [vmem:[#allocation2 + $0x80] sm:$0xff] %v602
    %653 = vst.msk [vmem:[#allocation2 + $0x88] sm:$0xff] %vm272, %v604
    %654 = vst [vmem:[#allocation2 + $0x90] sm:$0xff] %v382
    %655 = vst [vmem:[#allocation2 + $0x98] sm:$0xff] %v384
    %656 = vst [vmem:[#allocation2 + $0xa0] sm:$0xff] %v495
    %657 = vst [vmem:[#allocation2 + $0xa8] sm:$0xff] %v497
    %658 = vst [vmem:[#allocation2 + $0xb0] sm:$0xff] %v608
    %659 = vst.msk [vmem:[#allocation2 + $0xb8] sm:$0xff] %vm272, %v610
    %660 = vst [vmem:[#allocation2 + $0xc0] sm:$0xff] %v388
    %661 = vst [vmem:[#allocation2 + $0xc8] sm:$0xff] %v390
    %662 = vst [vmem:[#allocation2 + $0xd0] sm:$0xff] %v501
    %663 = vst [vmem:[#allocation2 + $0xd8] sm:$0xff] %v503
    %664 = vst [vmem:[#allocation2 + $0xe0] sm:$0xff] %v614
    %665 = vst.msk [vmem:[#allocation2 + $0xe8] sm:$0xff] %vm272, %v616
    %666 = vst [vmem:[#allocation2 + $0xf0] sm:$0xff] %v394
    %667 = vst [vmem:[#allocation2 + $0xf8] sm:$0xff] %v396
    %668 = vst [vmem:[#allocation2 + $0x100] sm:$0xff] %v507
    %669 = vst [vmem:[#allocation2 + $0x108] sm:$0xff] %v509
    %670 = vst [vmem:[#allocation2 + $0x110] sm:$0xff] %v620
    %671 = vst.msk [vmem:[#allocation2 + $0x118] sm:$0xff] %vm272, %v622
    %672 = vst [vmem:[#allocation2 + $0x120] sm:$0xff] %v400
    %673 = vst [vmem:[#allocation2 + $0x128] sm:$0xff] %v402
    %674 = vst [vmem:[#allocation2 + $0x130] sm:$0xff] %v513
    %675 = vst [vmem:[#allocation2 + $0x138] sm:$0xff] %v515
    %676 = vst [vmem:[#allocation2 + $0x140] sm:$0xff] %v626
    %677 = vst.msk [vmem:[#allocation2 + $0x148] sm:$0xff] %vm272, %v628
    %678 = vst [vmem:[#allocation2 + $0x150] sm:$0xff] %v406
    %679 = vst [vmem:[#allocation2 + $0x158] sm:$0xff] %v408
    %680 = vst [vmem:[#allocation2 + $0x160] sm:$0xff] %v519
    %681 = vst [vmem:[#allocation2 + $0x168] sm:$0xff] %v521
    %682 = vst [vmem:[#allocation2 + $0x170] sm:$0xff] %v632
    %683 = vst.msk [vmem:[#allocation2 + $0x178] sm:$0xff] %vm272, %v634
    // Predicated region
    $region14: #{tpu_custom_call.1} parent=1 // pred_check
      _
    $region15: #{tpu_custom_call.1} parent=1 // pred_check_branch
      %685 = sbr.rel (0) target = $region17
    $region16: #{tpu_custom_call.1} parent=1 // pred_region
      %s687 = ssub.s32 6144, 6144
      %688 = vsyncadd [#allocation3], %s687
      %s689 = sshll.u32 [#allocation2], 4
      %s690 = int_to_ptr.vmem [resolvable:$true] %s689
      %695 = dma.vmem_to_hbm [thread:$0]  %s690, 6144, %s3, [#allocation3], 768, 768, 48
    $region17: #{tpu_custom_call.1} parent=1 // pred_fallthru
      _
    // Predicated region
    $region18: #{tpu_custom_call.1} parent=1 // pred_check
      _
    $region19: #{tpu_custom_call.1} parent=1 // pred_check_branch
      %697 = sbr.rel (0) target = $region21
    $region20: #{tpu_custom_call.1} parent=1 // pred_region
      %698 = dma.done [#allocation3], 6144
    $region21: #{tpu_custom_call.1} parent=1 // pred_fallthru
      _
    %699 = vsyncpa [#allocation3], 1

</llo_original>
